<compile_context>
chip_gen: v7x
topology: tpu7x:2x2x1
jax: 0.10.0
libtpu: 0.0.40
codegen_flags: <defaults>
</compile_context>

<pallas_src>
import math

import jax
import jax.numpy as jnp
from jax import lax
from jax.experimental import pallas as pl
from jax.experimental.pallas import tpu as pltpu


def _round_up(x, m):
    return (x + m - 1) // m * m


def _leaky_relu(x, slope=0.2):
    return jnp.where(x > 0, x, slope * x)


def _vmem_capacity_bytes():
    """Per-core VMEM capacity; conservative (v7x) fallback if unavailable."""
    try:
        info = pltpu.get_tpu_info()
        for name in ("vmem_capacity_bytes", "vmem_capacity", "vmem_bytes"):
            v = getattr(info, name, None)
            if v:
                return int(v)
    except Exception:
        pass
    return 64 << 20


def _choose_tile(n_rows, tile_rows):
    n8 = _round_up(max(n_rows, 1), 8)
    tile = min(_round_up(tile_rows, 8), n8)
    # v7x has 2 TensorCores: give the "parallel" grid >= 2 steps when the row
    # count allows it so both cores get work.
    if n8 >= 16 and pl.cdiv(n_rows, tile) < 2:
        tile = max(8, _round_up(pl.cdiv(n_rows, 2), 8))
    return tile


# ---------------------------------------------------------------------------
# Kernel
# ---------------------------------------------------------------------------
def relationv2_kernel(ft_ref, nb_ref, w1f_ref, w1n_ref, w2f_ref, w2n_ref,
                      r_ref, out_ref):
    ft = ft_ref[...]                         # (tile, in_f) f32
    nb = nb_ref[...]
    d = ft.shape[-1]                         # in_features (unpadded)
    beta_off = w2f_ref.shape[-1] - d         # = round_up(in_f, 128)
    cdt = w1f_ref.dtype                      # matmul-input dtype (f32 / bf16)

    # Layer 1: fused [gamma_hidden | beta_hidden] per branch (2 MXU matmuls).
    h_ft = jnp.dot(ft.astype(cdt), w1f_ref[...],
                   preferred_element_type=jnp.float32)
    h_nb = jnp.dot(nb.astype(cdt), w1n_ref[...],
                   preferred_element_type=jnp.float32)

    # Layer 2: block-diagonal fused weights -> [gamma_pre ... | beta_pre]
    # (2 MXU matmuls + add), f32 accumulation throughout.
    z = (jnp.dot(h_ft.astype(cdt), w2f_ref[...],
                 preferred_element_type=jnp.float32)
         + jnp.dot(h_nb.astype(cdt), w2n_ref[...],
                   preferred_element_type=jnp.float32))

    gamma = _leaky_relu(z[:, :d]) + 1.0                  # starts at lane 0
    beta = _leaky_relu(z[:, beta_off:beta_off + d])      # 128-aligned start

    # r is (1, in_f): broadcast over rows.
    r_v = gamma * r_ref[...] + beta
    m = ft + r_v - nb

    # F.normalize: m / max(||m||_2, 1e-12)  ==  m * rsqrt(max(sumsq, 1e-24)).
    sumsq = jnp.sum(m * m, axis=-1, keepdims=True)
    out_ref[...] = m * lax.rsqrt(jnp.maximum(sumsq, 1e-24))


# ---------------------------------------------------------------------------
# Parameter fusion (hoisted: call once per parameter set, reuse across calls)
# ---------------------------------------------------------------------------
def fuse_params(params, *, use_bf16=True):
    """Build the 4 fused weight tensors (+ r) consumed by the kernel."""
    out_f, in_f = params["gamma1_1"].shape
    hid = 2 * out_f
    in_f_lane = _round_up(in_f, 128)
    w2_width = in_f_lane + in_f            # gamma @ [0:in_f], beta @ [in_f_lane:]
    w_dtype = jnp.bfloat16 if use_bf16 else jnp.float32

    # Layer-1: x @ W1 -> [gamma_hidden | beta_hidden]   (torch (out,in) -> (in,out))
    w1f = jnp.concatenate([params["gamma1_1"].T, params["beta1_1"].T], axis=1)
    w1n = jnp.concatenate([params["gamma2_1"].T, params["beta2_1"].T], axis=1)

    # Layer-2: block-diagonal so h @ W2 -> [gamma_pre | pad | beta_pre].
    def layer2(wg, wb):
        w = jnp.zeros((hid, w2_width), jnp.float32)
        w = w.at[:out_f, :in_f].set(wg.T)
        w = w.at[out_f:, in_f_lane:in_f_lane + in_f].set(wb.T)
        return w

    w2f = layer2(params["gamma1_2"], params["beta1_2"])
    w2n = layer2(params["gamma2_2"], params["beta2_2"])

    return {
        "w1f": w1f.astype(w_dtype),
        "w1n": w1n.astype(w_dtype),
        "w2f": w2f.astype(w_dtype),
        "w2n": w2n.astype(w_dtype),
        "r": params["r"].astype(jnp.float32).reshape(1, in_f),
    }


# ---------------------------------------------------------------------------
# Forward wrapper
# ---------------------------------------------------------------------------
def relationv2_forward(ft, neighbor, fused, *, tile_rows=None):
    """ft, neighbor: [N, in_features]. fused: output of fuse_params(params)."""
    N, in_f = ft.shape
    assert neighbor.shape == ft.shape

    w1f, w1n = fused["w1f"], fused["w1n"]
    w2f, w2n = fused["w2f"], fused["w2n"]
    r = fused["r"]
    hid = w1f.shape[1]
    w2w = w2f.shape[1]
    w_isz = jnp.dtype(w1f.dtype).itemsize

    # Per-core VMEM budget (v7x: ~48 MiB, v5e/v6e: ~96 MiB).
    vmem_cap = _vmem_capacity_bytes()
    vmem_budget = (vmem_cap * 3) // 4
    if tile_rows is None:
        tile_rows = 1024 if vmem_cap >= (96 << 20) else 512

    tile = _choose_tile(N, tile_rows)

    def vmem_need(t):
        weights = (2 * in_f * hid + 2 * hid * w2w) * w_isz + in_f * 4
        io = 6 * t * in_f * 4                       # ft/nb/out, double-buffered
        tmp = t * (2 * hid + w2w + 4 * in_f) * 4    # h_ft, h_nb, z, gamma/beta/m
        return weights + io + tmp

    while tile > 8 and vmem_need(tile) > vmem_budget:
        tile = max(8, _round_up(tile // 2, 8))

    grid = (pl.cdiv(N, tile),)      # ragged trailing block is clipped by Pallas
    vmem_limit = int(min(max(vmem_need(tile) + (4 << 20), 32 << 20), vmem_budget))

    row_spec = pl.BlockSpec((tile, in_f), lambda i: (i, 0))
    resident = pl.BlockSpec(memory_space=pltpu.MemorySpace.VMEM)  # single-buffered

    # Advisory cost estimate for XLA scheduling.
    flops = N * (4 * in_f * hid + 4 * hid * w2w + 12 * in_f)
    bytes_accessed = (3 * N * in_f * 4
                      + (2 * in_f * hid + 2 * hid * w2w) * w_isz + in_f * 4)
    cost = pl.CostEstimate(flops=flops, transcendentals=N,
                           bytes_accessed=bytes_accessed)

    if ft.dtype != jnp.float32:
        ft = ft.astype(jnp.float32)
    if neighbor.dtype != jnp.float32:
        neighbor = neighbor.astype(jnp.float32)

    return pl.pallas_call(
        relationv2_kernel,
        out_shape=jax.ShapeDtypeStruct((N, in_f), jnp.float32),
        grid=grid,
        in_specs=[row_spec, row_spec,
                  resident, resident, resident, resident, resident],
        out_specs=row_spec,
        compiler_params=pltpu.CompilerParams(
            dimension_semantics=("parallel",),
            vmem_limit_bytes=vmem_limit),
        cost_estimate=cost,
    )(ft, neighbor, w1f, w1n, w2f, w2n, r)


# ---------------------------------------------------------------------------
# Pure-JAX reference & synthetic init
# ---------------------------------------------------------------------------
def relationv2_reference(ft, nb, params):
    """Pure-JAX reference mirroring the PyTorch module exactly."""
    def lin(x, w):  # torch Linear no bias: x @ w.T
        return x @ w.T
    g1 = lin(lin(ft, params["gamma1_1"]), params["gamma1_2"])
    g2 = lin(lin(nb, params["gamma2_1"]), params["gamma2_2"])
    gamma = _leaky_relu(g1 + g2) + 1.0
    b1 = lin(lin(ft, params["beta1_1"]), params["beta1_2"])
    b2 = lin(lin(nb, params["beta2_1"]), params["beta2_2"])
    beta = _leaky_relu(b1 + b2)
    r_v = gamma * params["r"] + beta
    m = ft + r_v - nb
    norm = jnp.sqrt(jnp.sum(m * m, axis=-1, keepdims=True))
    return m / jnp.maximum(norm, 1e-12)


def init_params(key, in_features, out_features):
    """Deterministic synthetic init (mimics torch defaults in spirit)."""
    ks = jax.random.split(key, 9)

    def lin_w(k, fan_out, fan_in):
        bound = 1.0 / math.sqrt(fan_in)
        return jax.random.uniform(k, (fan_out, fan_in), jnp.float32,
                                  minval=-bound, maxval=bound)

    stdv = 1.0 / math.sqrt(in_features)
    return {
        "gamma1_1": lin_w(ks[0], out_features, in_features),
        "gamma1_2": lin_w(ks[1], in_features, out_features),
        "gamma2_1": lin_w(ks[2], out_features, in_features),
        "gamma2_2": lin_w(ks[3], in_features, out_features),
        "beta1_1":  lin_w(ks[4], out_features, in_features),
        "beta1_2":  lin_w(ks[5], in_features, out_features),
        "beta2_1":  lin_w(ks[6], out_features, in_features),
        "beta2_2":  lin_w(ks[7], in_features, out_features),
        "r": jax.random.uniform(ks[8], (1, in_features), jnp.float32,
                                minval=-stdv, maxval=stdv),
    }


if __name__ == "__main__":
    N, in_features, out_features = 16, 32, 16

    key = jax.random.PRNGKey(0)
    k_ft, k_nb, k_p = jax.random.split(key, 3)
    ft = jax.random.normal(k_ft, (N, in_features), jnp.float32)
    neighbor = jax.random.normal(k_nb, (N, in_features), jnp.float32)
    params = init_params(k_p, in_features, out_features)

    ref = relationv2_reference(ft, neighbor, params)

    # 1) Exact-f32 matmul path: tight tolerance.
    fused_f32 = fuse_params(params, use_bf16=False)
    out_f32 = jax.block_until_ready(relationv2_forward(ft, neighbor, fused_f32))
    assert out_f32.shape == (N, in_features)
    assert jnp.allclose(out_f32, ref, atol=1e-4, rtol=1e-4), "f32 mismatch"

    # 2) bf16 MXU-input path (recommended default on v5e/v7x): looser tolerance.
    fused_bf16 = fuse_params(params, use_bf16=True)
    out_bf16 = jax.block_until_ready(relationv2_forward(ft, neighbor, fused_bf16))
    assert jnp.allclose(out_bf16, ref, atol=5e-2, rtol=5e-2), "bf16 mismatch"

    # 3) Ragged row count (exercises the clipped trailing block).
    N2 = 13
    ft2, nb2 = ft[:N2], neighbor[:N2]
    ref2 = relationv2_reference(ft2, nb2, params)
    out2 = jax.block_until_ready(relationv2_forward(ft2, nb2, fused_f32))
    assert out2.shape == (N2, in_features)
    assert jnp.allclose(out2, ref2, atol=1e-4, rtol=1e-4), "ragged-N mismatch"

    print("KERNEL_OK")
</pallas_src>

<mosaic_0001>
module attributes {stable_mosaic.version = 11 : i64} {
  func.func @relationv2_kernel(%arg0: i32, %arg1: memref<8x32xf32, #tpu.memory_space<vmem>>, %arg2: memref<8x32xf32, #tpu.memory_space<vmem>>, %arg3: memref<32x32xf32, #tpu.memory_space<vmem>>, %arg4: memref<32x32xf32, #tpu.memory_space<vmem>>, %arg5: memref<32x160xf32, #tpu.memory_space<vmem>>, %arg6: memref<32x160xf32, #tpu.memory_space<vmem>>, %arg7: memref<1x32xf32, #tpu.memory_space<vmem>>, %arg8: memref<8x32xf32, #tpu.memory_space<vmem>>) attributes {dimension_semantics = [#tpu.dimension_semantics<parallel>], iteration_bounds = array<i64: 2>, scalar_prefetch = 0 : i64, scratch_operands = 0 : i64, tpu.core_type = #tpu.core_type<tc>, window_params = [{transform_indices = @transform_0, window_bounds = array<i64: 8, 32>}, {transform_indices = @transform_1, window_bounds = array<i64: 8, 32>}, {pipeline_mode = #tpu.pipeline_mode<synchronous>, transform_indices = @transform_2, window_bounds = array<i64: 32, 32>}, {pipeline_mode = #tpu.pipeline_mode<synchronous>, transform_indices = @transform_3, window_bounds = array<i64: 32, 32>}, {pipeline_mode = #tpu.pipeline_mode<synchronous>, transform_indices = @transform_4, window_bounds = array<i64: 32, 160>}, {pipeline_mode = #tpu.pipeline_mode<synchronous>, transform_indices = @transform_5, window_bounds = array<i64: 32, 160>}, {pipeline_mode = #tpu.pipeline_mode<synchronous>, transform_indices = @transform_6, window_bounds = array<i64: 1, 32>}, {transform_indices = @transform_7, window_bounds = array<i64: 8, 32>}]} {
    %c0 = arith.constant 0 : index
    %c0_0 = arith.constant 0 : index
    %0 = vector.load %arg1[%c0, %c0_0] : memref<8x32xf32, #tpu.memory_space<vmem>>, vector<8x32xf32>
    %c0_1 = arith.constant 0 : index
    %c0_2 = arith.constant 0 : index
    %1 = vector.load %arg2[%c0_1, %c0_2] : memref<8x32xf32, #tpu.memory_space<vmem>>, vector<8x32xf32>
    %c0_3 = arith.constant 0 : index
    %c0_4 = arith.constant 0 : index
    %2 = vector.load %arg3[%c0_3, %c0_4] : memref<32x32xf32, #tpu.memory_space<vmem>>, vector<32x32xf32>
    %cst = arith.constant dense<0.000000e+00> : vector<8x32xf32>
    %3 = tpu.matmul %0, %2, %cst {dimension_numbers = #tpu.dot_dimension_numbers<[1], [0], [0], [1], [0, 0, 1, 1], [], []>} : vector<8x32xf32>, vector<32x32xf32>, vector<8x32xf32> -> vector<8x32xf32>
    %c0_5 = arith.constant 0 : index
    %c0_6 = arith.constant 0 : index
    %4 = vector.load %arg4[%c0_5, %c0_6] : memref<32x32xf32, #tpu.memory_space<vmem>>, vector<32x32xf32>
    %cst_7 = arith.constant dense<0.000000e+00> : vector<8x32xf32>
    %5 = tpu.matmul %1, %4, %cst_7 {dimension_numbers = #tpu.dot_dimension_numbers<[1], [0], [0], [1], [0, 0, 1, 1], [], []>} : vector<8x32xf32>, vector<32x32xf32>, vector<8x32xf32> -> vector<8x32xf32>
    %c0_8 = arith.constant 0 : index
    %c0_9 = arith.constant 0 : index
    %6 = vector.load %arg5[%c0_8, %c0_9] : memref<32x160xf32, #tpu.memory_space<vmem>>, vector<32x160xf32>
    %cst_10 = arith.constant dense<0.000000e+00> : vector<8x160xf32>
    %7 = tpu.matmul %3, %6, %cst_10 {dimension_numbers = #tpu.dot_dimension_numbers<[1], [0], [0], [1], [0, 0, 1, 1], [], []>} : vector<8x32xf32>, vector<32x160xf32>, vector<8x160xf32> -> vector<8x160xf32>
    %c0_11 = arith.constant 0 : index
    %c0_12 = arith.constant 0 : index
    %8 = vector.load %arg6[%c0_11, %c0_12] : memref<32x160xf32, #tpu.memory_space<vmem>>, vector<32x160xf32>
    %cst_13 = arith.constant dense<0.000000e+00> : vector<8x160xf32>
    %9 = tpu.matmul %5, %8, %cst_13 {dimension_numbers = #tpu.dot_dimension_numbers<[1], [0], [0], [1], [0, 0, 1, 1], [], []>} : vector<8x32xf32>, vector<32x160xf32>, vector<8x160xf32> -> vector<8x160xf32>
    %10 = arith.addf %7, %9 : vector<8x160xf32>
    %11 = vector.extract_strided_slice %10 {offsets = [0, 0], sizes = [8, 32], strides = [1, 1]} : vector<8x160xf32> to vector<8x32xf32>
    %cst_14 = arith.constant 0.000000e+00 : f32
    %12 = vector.broadcast %cst_14 : f32 to vector<8x32xf32>
    %13 = arith.cmpf ogt, %11, %12 : vector<8x32xf32>
    %cst_15 = arith.constant 2.000000e-01 : f32
    %14 = vector.broadcast %cst_15 : f32 to vector<8x32xf32>
    %15 = arith.mulf %14, %11 : vector<8x32xf32>
    %16 = arith.select %13, %11, %15 : vector<8x32xi1>, vector<8x32xf32>
    %cst_16 = arith.constant 1.000000e+00 : f32
    %17 = vector.broadcast %cst_16 : f32 to vector<8x32xf32>
    %18 = arith.addf %16, %17 : vector<8x32xf32>
    %19 = vector.extract_strided_slice %10 {offsets = [0, 128], sizes = [8, 32], strides = [1, 1]} : vector<8x160xf32> to vector<8x32xf32>
    %cst_17 = arith.constant 0.000000e+00 : f32
    %20 = vector.broadcast %cst_17 : f32 to vector<8x32xf32>
    %21 = arith.cmpf ogt, %19, %20 : vector<8x32xf32>
    %cst_18 = arith.constant 2.000000e-01 : f32
    %22 = vector.broadcast %cst_18 : f32 to vector<8x32xf32>
    %23 = arith.mulf %22, %19 : vector<8x32xf32>
    %24 = arith.select %21, %19, %23 : vector<8x32xi1>, vector<8x32xf32>
    %c0_19 = arith.constant 0 : index
    %c0_20 = arith.constant 0 : index
    %25 = vector.load %arg7[%c0_19, %c0_20] : memref<1x32xf32, #tpu.memory_space<vmem>>, vector<1x32xf32>
    %26 = vector.broadcast %25 : vector<1x32xf32> to vector<8x32xf32>
    %27 = arith.mulf %18, %26 : vector<8x32xf32>
    %28 = arith.addf %27, %24 : vector<8x32xf32>
    %29 = arith.addf %0, %28 : vector<8x32xf32>
    %30 = arith.subf %29, %1 : vector<8x32xf32>
    %31 = arith.mulf %30, %30 : vector<8x32xf32>
    %cst_21 = arith.constant dense<0.000000e+00> : vector<8xf32>
    %32 = vector.multi_reduction <add>, %31, %cst_21 [1] : vector<8x32xf32> to vector<8xf32>
    %33 = vector.shape_cast %32 : vector<8xf32> to vector<8x1xf32>
    %cst_22 = arith.constant 1.000000e-24 : f32
    %34 = vector.broadcast %cst_22 : f32 to vector<8x1xf32>
    %35 = arith.maximumf %33, %34 : vector<8x1xf32>
    %36 = math.rsqrt %35 : vector<8x1xf32>
    %37 = vector.broadcast %36 : vector<8x1xf32> to vector<8x32xf32>
    %38 = arith.mulf %30, %37 : vector<8x32xf32>
    %c0_23 = arith.constant 0 : index
    %c0_24 = arith.constant 0 : index
    %39 = vector.load %arg8[%c0_23, %c0_24] : memref<8x32xf32, #tpu.memory_space<vmem>>, vector<8x32xf32>
    tpu.vector_store %arg8[%c0_23, %c0_24], %38 {strides = array<i32>} : memref<8x32xf32, #tpu.memory_space<vmem>>, vector<8x32xf32>,
    return
  }
  func.func @transform_0(%arg0: i32) -> (i32, i32) {
    %c0_i32 = arith.constant 0 : i32
    %c0_i32_0 = arith.constant 0 : i32
    return %arg0, %c0_i32 : i32, i32
  }
  func.func @transform_1(%arg0: i32) -> (i32, i32) {
    %c0_i32 = arith.constant 0 : i32
    %c0_i32_0 = arith.constant 0 : i32
    return %arg0, %c0_i32 : i32, i32
  }
  func.func @transform_2(%arg0: i32) -> (i32, i32) {
    %c0_i32 = arith.constant 0 : i32
    %c0_i32_0 = arith.constant 0 : i32
    %c0_i32_1 = arith.constant 0 : i32
    return %c0_i32, %c0_i32_0 : i32, i32
  }
  func.func @transform_3(%arg0: i32) -> (i32, i32) {
    %c0_i32 = arith.constant 0 : i32
    %c0_i32_0 = arith.constant 0 : i32
    %c0_i32_1 = arith.constant 0 : i32
    return %c0_i32, %c0_i32_0 : i32, i32
  }
  func.func @transform_4(%arg0: i32) -> (i32, i32) {
    %c0_i32 = arith.constant 0 : i32
    %c0_i32_0 = arith.constant 0 : i32
    %c0_i32_1 = arith.constant 0 : i32
    return %c0_i32, %c0_i32_0 : i32, i32
  }
  func.func @transform_5(%arg0: i32) -> (i32, i32) {
    %c0_i32 = arith.constant 0 : i32
    %c0_i32_0 = arith.constant 0 : i32
    %c0_i32_1 = arith.constant 0 : i32
    return %c0_i32, %c0_i32_0 : i32, i32
  }
  func.func @transform_6(%arg0: i32) -> (i32, i32) {
    %c0_i32 = arith.constant 0 : i32
    %c0_i32_0 = arith.constant 0 : i32
    %c0_i32_1 = arith.constant 0 : i32
    return %c0_i32, %c0_i32_0 : i32, i32
  }
  func.func @transform_7(%arg0: i32) -> (i32, i32) {
    %c0_i32 = arith.constant 0 : i32
    %c0_i32_0 = arith.constant 0 : i32
    return %arg0, %c0_i32 : i32, i32
  }
}

</mosaic_0001>

<llo_original>
// kernel: tpu_custom_call.1
$region0: #{tpu_custom_call.1}
  #allocation0 [shape = 'u32[]', space=smem, size = 0x4, offset = 0x4, fixed_abs, tag = 'smem constant byte address 0x4 - core index']
  #allocation1 [shape = 'u32[144,128]{1,0:T(1,128)}', space=vmem, size = 0x12000, scoped, tag = 'internal scratch']
  %s0 = inlined_call_operand.hbm [shape: f32[16,32], index: 0, kind: input, shape index: {}]
  %s1 = inlined_call_operand.hbm [shape: f32[16,32], index: 1, kind: input, shape index: {}]
  %s2 = inlined_call_operand.hbm [shape: f32[32,32], index: 2, kind: input, shape index: {}]
  %s3 = inlined_call_operand.hbm [shape: f32[32,32], index: 3, kind: input, shape index: {}]
  %s4 = inlined_call_operand.hbm [shape: f32[32,160], index: 4, kind: input, shape index: {}]
  %s5 = inlined_call_operand.hbm [shape: f32[32,160], index: 5, kind: input, shape index: {}]
  %s6 = inlined_call_operand.vmem [shape: f32[1,32], index: 6, kind: input, shape index: {}]
  %s7 = inlined_call_operand.hbm [shape: f32[16,32], index: 7, kind: output, shape index: {}]
  %s8 = sld [smem:[#allocation0]]
  $region85: #{tpu_custom_call.1} parent=0
    _
  %s10 = ssub.s32 1, %s8
  %s11 = scalar_select 0, %s10, %s8
  $region1: #{tpu_custom_call.1} parent=0
    #allocation2 [shape = 'u8[8192]{0}', space=vmem, size = 0x2000, scoped, tag = 'input window, operand 0']
    #allocation3 [shape = 's32[2]{0}', space=sflag, size = 0x8, scoped, tag = 'scoped memory for tpu_custom_call.1']
    #allocation4 [shape = 's32[2]{0}', space=sflag, size = 0x8, scoped, tag = 'scoped memory for tpu_custom_call.1']
    #allocation5 [shape = 'u8[8192]{0}', space=vmem, size = 0x2000, scoped, tag = 'input window, operand 1']
    #allocation6 [shape = 's32[2]{0}', space=sflag, size = 0x8, scoped, tag = 'scoped memory for tpu_custom_call.1']
    #allocation7 [shape = 'u8[16384]{0}', space=vmem, size = 0x4000, scoped, tag = 'input window, operand 2, single buffered']
    #allocation8 [shape = 'u8[16384]{0}', space=vmem, size = 0x4000, scoped, tag = 'input window, operand 3, single buffered']
    #allocation9 [shape = 's32[1]{0}', space=sflag, size = 0x4, scoped, tag = 'scoped memory for tpu_custom_call.1']
    #allocation10 [shape = 'u8[32768]{0}', space=vmem, size = 0x8000, scoped, tag = 'input window, operand 4, single buffered']
    #allocation11 [shape = 'u8[32768]{0}', space=vmem, size = 0x8000, scoped, tag = 'input window, operand 5, single buffered']
    #allocation12 [shape = 's32[1]{0}', space=sflag, size = 0x4, scoped, tag = 'scoped memory for tpu_custom_call.1']
    #allocation13 [shape = 'u8[8192]{0}', space=vmem, size = 0x2000, scoped, tag = 'output window, operand 0']
    %12 = vsyncpa [#allocation3], 0
    %s13 = scalar_lea.sflag [#allocation3], 1
    %14 = vsyncpa %s13, 0
    %15 = vsyncpa [#allocation6], 0
    %s16 = scalar_lea.sflag [#allocation6], 1
    %17 = vsyncpa %s16, 0
    %18 = vsyncpa [#allocation9], 0
    %19 = vsyncpa [#allocation12], 0
    %20 = vsyncpa [#allocation4], 0
    %s21 = scalar_lea.sflag [#allocation4], 1
    %22 = vsyncpa %s21, 0
    loop: start=0, step=1, limit=4
    $region2: #{tpu_custom_call.1} parent=1 // loop_pre_header
      _
    $region3: #{tpu_custom_call.1} parent=1 // loop_header
      %s24 = sphi 0, %s28
      %p25 = scmp.ge.s32.totalorder %s24, 4
      %s34 = sphi 0, %s36
      %s37 = sphi 0, %s34
      %s38 = sphi 0, %s37
      %s54 = sphi 0, %s38
      %s60 = sphi 0, %s62
      %s63 = sphi 0, %s60
      %s64 = sphi 0, %s63
      %s80 = sphi 0, %s64
      %s84 = sphi 0, %s84
      %s86 = sphi 0, %s84
      %s87 = sphi 0, %s86
      %s101 = sphi 0, %s87
      %s105 = sphi 0, %s105
      %s107 = sphi 0, %s105
      %s108 = sphi 0, %s107
      %s122 = sphi 0, %s108
      %s126 = sphi 0, %s126
      %s128 = sphi 0, %s126
      %s129 = sphi 0, %s128
      %s143 = sphi 0, %s129
      %s147 = sphi 0, %s147
      %s149 = sphi 0, %s147
      %s150 = sphi 0, %s149
      %s164 = sphi 0, %s150
      %s168 = sphi 0, %s168
      %s170 = sphi 0, %s168
      %s171 = sphi 0, %s170
      %s185 = sphi 0, %s171
      %s191 = sphi 0, %s193
      %s194 = sphi 0, %s191
      %s195 = sphi 0, %s194
      %s211 = sphi 0, %s195
    $region4: #{tpu_custom_call.1} parent=1 // loop_header_branch
      %27 = sbr.rel (%p25) target = $region8
    $region5: #{tpu_custom_call.1} parent=1 // loop_body
      %s29 = ssub.s32 %s24, 1
      %s30 = ssub.s32 %s24, 2
      %s31 = sadd.s32 %s24, 1
      %s32 = ssub.s32 %s24, %s31
      %p33 = scmp.eq.s32.totalorder %s32, 0
      %s35 = sadd.s32 %s34, 1
      %s36 = scalar_select %p33, %s34, %s35
      %p39 = pneg %p33
      %p40 = scmp.eq.s32.totalorder %s24, 1
      %p41 = por %p39, %p40
      %p42 = scmp.ne.s32.totalorder %s34, %s37
      %p43 = scmp.eq.s32.totalorder %s24, 0
      %p44 = por %p42, %p43
      %p45 = scmp.ne.s32.totalorder %s34, %s37
      %p46 = scmp.eq.s32.totalorder %s29, 1
      %p47 = por %p45, %p46
      %p48 = scmp.ne.s32.totalorder %s37, %s38
      %p49 = scmp.eq.s32.totalorder %s29, 0
      %p50 = por %p48, %p49
      %p51 = scmp.ne.s32.totalorder %s37, %s38
      %p52 = scmp.eq.s32.totalorder %s30, 1
      %p53 = por %p51, %p52
      %p55 = scmp.ne.s32.totalorder %s38, %s54
      %p56 = scmp.eq.s32.totalorder %s30, 0
      %p57 = por %p55, %p56
      %s58 = ssub.s32 %s24, %s31
      %p59 = scmp.eq.s32.totalorder %s58, 0
      %s61 = sadd.s32 %s60, 1
      %s62 = scalar_select %p59, %s60, %s61
      %p65 = pneg %p59
      %p66 = scmp.eq.s32.totalorder %s24, 1
      %p67 = por %p65, %p66
      %p68 = scmp.ne.s32.totalorder %s60, %s63
      %p69 = scmp.eq.s32.totalorder %s24, 0
      %p70 = por %p68, %p69
      %p71 = scmp.ne.s32.totalorder %s60, %s63
      %p72 = scmp.eq.s32.totalorder %s29, 1
      %p73 = por %p71, %p72
      %p74 = scmp.ne.s32.totalorder %s63, %s64
      %p75 = scmp.eq.s32.totalorder %s29, 0
      %p76 = por %p74, %p75
      %p77 = scmp.ne.s32.totalorder %s63, %s64
      %p78 = scmp.eq.s32.totalorder %s30, 1
      %p79 = por %p77, %p78
      %p81 = scmp.ne.s32.totalorder %s64, %s80
      %p82 = scmp.eq.s32.totalorder %s30, 0
      %p83 = por %p81, %p82
      %s85 = sadd.s32 %s84, 1
      %p88 = scmp.eq.s32.totalorder %s24, 1
      %p89 = scmp.ne.s32.totalorder %s84, %s86
      %p90 = scmp.eq.s32.totalorder %s24, 0
      %p91 = por %p89, %p90
      %p92 = scmp.ne.s32.totalorder %s84, %s86
      %p93 = scmp.eq.s32.totalorder %s29, 1
      %p94 = por %p92, %p93
      %p95 = scmp.ne.s32.totalorder %s86, %s87
      %p96 = scmp.eq.s32.totalorder %s29, 0
      %p97 = por %p95, %p96
      %p98 = scmp.ne.s32.totalorder %s86, %s87
      %p99 = scmp.eq.s32.totalorder %s30, 1
      %p100 = por %p98, %p99
      %p102 = scmp.ne.s32.totalorder %s87, %s101
      %p103 = scmp.eq.s32.totalorder %s30, 0
      %p104 = por %p102, %p103
      %s106 = sadd.s32 %s105, 1
      %p109 = scmp.eq.s32.totalorder %s24, 1
      %p110 = scmp.ne.s32.totalorder %s105, %s107
      %p111 = scmp.eq.s32.totalorder %s24, 0
      %p112 = por %p110, %p111
      %p113 = scmp.ne.s32.totalorder %s105, %s107
      %p114 = scmp.eq.s32.totalorder %s29, 1
      %p115 = por %p113, %p114
      %p116 = scmp.ne.s32.totalorder %s107, %s108
      %p117 = scmp.eq.s32.totalorder %s29, 0
      %p118 = por %p116, %p117
      %p119 = scmp.ne.s32.totalorder %s107, %s108
      %p120 = scmp.eq.s32.totalorder %s30, 1
      %p121 = por %p119, %p120
      %p123 = scmp.ne.s32.totalorder %s108, %s122
      %p124 = scmp.eq.s32.totalorder %s30, 0
      %p125 = por %p123, %p124
      %s127 = sadd.s32 %s126, 1
      %p130 = scmp.eq.s32.totalorder %s24, 1
      %p131 = scmp.ne.s32.totalorder %s126, %s128
      %p132 = scmp.eq.s32.totalorder %s24, 0
      %p133 = por %p131, %p132
      %p134 = scmp.ne.s32.totalorder %s126, %s128
      %p135 = scmp.eq.s32.totalorder %s29, 1
      %p136 = por %p134, %p135
      %p137 = scmp.ne.s32.totalorder %s128, %s129
      %p138 = scmp.eq.s32.totalorder %s29, 0
      %p139 = por %p137, %p138
      %p140 = scmp.ne.s32.totalorder %s128, %s129
      %p141 = scmp.eq.s32.totalorder %s30, 1
      %p142 = por %p140, %p141
      %p144 = scmp.ne.s32.totalorder %s129, %s143
      %p145 = scmp.eq.s32.totalorder %s30, 0
      %p146 = por %p144, %p145
      %s148 = sadd.s32 %s147, 1
      %p151 = scmp.eq.s32.totalorder %s24, 1
      %p152 = scmp.ne.s32.totalorder %s147, %s149
      %p153 = scmp.eq.s32.totalorder %s24, 0
      %p154 = por %p152, %p153
      %p155 = scmp.ne.s32.totalorder %s147, %s149
      %p156 = scmp.eq.s32.totalorder %s29, 1
      %p157 = por %p155, %p156
      %p158 = scmp.ne.s32.totalorder %s149, %s150
      %p159 = scmp.eq.s32.totalorder %s29, 0
      %p160 = por %p158, %p159
      %p161 = scmp.ne.s32.totalorder %s149, %s150
      %p162 = scmp.eq.s32.totalorder %s30, 1
      %p163 = por %p161, %p162
      %p165 = scmp.ne.s32.totalorder %s150, %s164
      %p166 = scmp.eq.s32.totalorder %s30, 0
      %p167 = por %p165, %p166
      %s169 = sadd.s32 %s168, 1
      %p172 = scmp.eq.s32.totalorder %s24, 1
      %p173 = scmp.ne.s32.totalorder %s168, %s170
      %p174 = scmp.eq.s32.totalorder %s24, 0
      %p175 = por %p173, %p174
      %p176 = scmp.ne.s32.totalorder %s168, %s170
      %p177 = scmp.eq.s32.totalorder %s29, 1
      %p178 = por %p176, %p177
      %p179 = scmp.ne.s32.totalorder %s170, %s171
      %p180 = scmp.eq.s32.totalorder %s29, 0
      %p181 = por %p179, %p180
      %p182 = scmp.ne.s32.totalorder %s170, %s171
      %p183 = scmp.eq.s32.totalorder %s30, 1
      %p184 = por %p182, %p183
      %p186 = scmp.ne.s32.totalorder %s171, %s185
      %p187 = scmp.eq.s32.totalorder %s30, 0
      %p188 = por %p186, %p187
      %s189 = ssub.s32 %s24, %s31
      %p190 = scmp.eq.s32.totalorder %s189, 0
      %s192 = sadd.s32 %s191, 1
      %s193 = scalar_select %p190, %s191, %s192
      %p196 = pneg %p190
      %p197 = scmp.eq.s32.totalorder %s24, 1
      %p198 = por %p196, %p197
      %p199 = scmp.ne.s32.totalorder %s191, %s194
      %p200 = scmp.eq.s32.totalorder %s24, 0
      %p201 = por %p199, %p200
      %p202 = scmp.ne.s32.totalorder %s191, %s194
      %p203 = scmp.eq.s32.totalorder %s29, 1
      %p204 = por %p202, %p203
      %p205 = scmp.ne.s32.totalorder %s194, %s195
      %p206 = scmp.eq.s32.totalorder %s29, 0
      %p207 = por %p205, %p206
      %p208 = scmp.ne.s32.totalorder %s194, %s195
      %p209 = scmp.eq.s32.totalorder %s30, 1
      %p210 = por %p208, %p209
      %p212 = scmp.ne.s32.totalorder %s195, %s211
      %p213 = scmp.eq.s32.totalorder %s30, 0
      %p214 = por %p212, %p213
      %p215 = scmp.le.s32.totalorder 1, %s24
      %p216 = scmp.lt.s32.totalorder %s24, 3
      %p217 = pnand %p215, %p216
      %p218 = pneg %p217
      // Predicated region
      $region9: #{tpu_custom_call.1} parent=5 // pred_check
        _
      $region10: #{tpu_custom_call.1} parent=5 // pred_check_branch
        %220 = sbr.rel (%p217) target = $region12
      $region11: #{tpu_custom_call.1} parent=5 // pred_region
        %s221 = ssub.s32 %s24, 1
        // Predicated region
        $region13: #{tpu_custom_call.1} parent=11 // pred_check
          %p222 = pneg %p97
        $region14: #{tpu_custom_call.1} parent=11 // pred_check_branch
          %224 = sbr.rel (%p222) target = $region16
        $region15: #{tpu_custom_call.1} parent=11 // pred_region
          %s226 = ssub.s32 512, 512
          %227 = vsyncadd [#allocation6], %s226
          %s228 = sshll.u32 [#allocation7], 4
          %s229 = int_to_ptr.vmem [resolvable:$true] %s228
          %234 = dma.hbm_to_vmem [thread:$0]  %s2, 512, %s229, [#allocation6], 128, 128, 8
        $region16: #{tpu_custom_call.1} parent=11 // pred_fallthru
          _
        // Predicated region
        $region17: #{tpu_custom_call.1} parent=11 // pred_check
          %p235 = pneg %p118
        $region18: #{tpu_custom_call.1} parent=11 // pred_check_branch
          %237 = sbr.rel (%p235) target = $region20
        $region19: #{tpu_custom_call.1} parent=11 // pred_region
          %s239 = ssub.s32 512, 512
          %240 = vsyncadd [#allocation9], %s239
          %s241 = sshll.u32 [#allocation8], 4
          %s242 = int_to_ptr.vmem [resolvable:$true] %s241
          %247 = dma.hbm_to_vmem [thread:$0]  %s3, 512, %s242, [#allocation9], 128, 128, 8
        $region20: #{tpu_custom_call.1} parent=11 // pred_fallthru
          _
        // Predicated region
        $region21: #{tpu_custom_call.1} parent=11 // pred_check
          %p248 = pneg %p139
        $region22: #{tpu_custom_call.1} parent=11 // pred_check_branch
          %250 = sbr.rel (%p248) target = $region24
        $region23: #{tpu_custom_call.1} parent=11 // pred_region
          %s252 = ssub.s32 1024, 1024
          %253 = vsyncadd [#allocation9], %s252
          %s254 = sshll.u32 [#allocation10], 4
          %s255 = int_to_ptr.vmem [resolvable:$true] %s254
          %260 = dma.hbm_to_vmem [thread:$0]  %s4, 1024, %s255, [#allocation9], 256, 256, 16
        $region24: #{tpu_custom_call.1} parent=11 // pred_fallthru
          _
        // Predicated region
        $region25: #{tpu_custom_call.1} parent=11 // pred_check
          %p261 = pneg %p160
        $region26: #{tpu_custom_call.1} parent=11 // pred_check_branch
          %263 = sbr.rel (%p261) target = $region28
        $region27: #{tpu_custom_call.1} parent=11 // pred_region
          %s265 = ssub.s32 1024, 1024
          %266 = vsyncadd [#allocation12], %s265
          %s267 = sshll.u32 [#allocation11], 4
          %s268 = int_to_ptr.vmem [resolvable:$true] %s267
          %273 = dma.hbm_to_vmem [thread:$0]  %s5, 1024, %s268, [#allocation12], 256, 256, 16
        $region28: #{tpu_custom_call.1} parent=11 // pred_fallthru
          _
        // Predicated region
        $region29: #{tpu_custom_call.1} parent=11 // pred_check
          %p274 = pneg %p181
        $region30: #{tpu_custom_call.1} parent=11 // pred_check_branch
          %276 = sbr.rel (%p274) target = $region32
        $region31: #{tpu_custom_call.1} parent=11 // pred_region
          _
        $region32: #{tpu_custom_call.1} parent=11 // pred_fallthru
          _
      $region12: #{tpu_custom_call.1} parent=5 // pred_fallthru
        _
      %p277 = scmp.lt.s32.totalorder %s24, 2
      // Predicated region
      $region33: #{tpu_custom_call.1} parent=5 // pred_check
        %p278 = pneg %p277
      $region34: #{tpu_custom_call.1} parent=5 // pred_check_branch
        %280 = sbr.rel (%p278) target = $region36
      $region35: #{tpu_custom_call.1} parent=5 // pred_region
        // Predicated region
        $region37: #{tpu_custom_call.1} parent=35 // pred_check
          %p281 = pneg %p44
        $region38: #{tpu_custom_call.1} parent=35 // pred_check_branch
          %283 = sbr.rel (%p281) target = $region40
        $region39: #{tpu_custom_call.1} parent=35 // pred_region
          %s284 = sand.u32 %s34, 1
          %s285 = scalar_lea.sflag [#allocation3], %s284
          %s286 = sand.u32 %s34, 1
          %s287 = smul.addr %s286, 8
          %s288 = scalar_lea.vmem [#allocation2], %s287
          %s290 = ssub.s32 128, 128
          %291 = vsyncadd %s285, %s290
          %s292 = smul.addr %s24, 128
          %s293 = scalar_lea.hbm %s0, %s292
          %s295 = sshll.u32 %s288, 4
          %s296 = int_to_ptr.vmem [resolvable:$true] %s295
          %298 = dma.hbm_to_vmem [thread:$0]  %s293, 128, %s296, %s285
        $region40: #{tpu_custom_call.1} parent=35 // pred_fallthru
          _
        // Predicated region
        $region41: #{tpu_custom_call.1} parent=35 // pred_check
          %p299 = pneg %p70
        $region42: #{tpu_custom_call.1} parent=35 // pred_check_branch
          %301 = sbr.rel (%p299) target = $region44
        $region43: #{tpu_custom_call.1} parent=35 // pred_region
          %s302 = sand.u32 %s24, 1
          %s303 = scalar_lea.sflag [#allocation6], %s302
          %s304 = sand.u32 %s60, 1
          %s305 = smul.addr %s304, 8
          %s306 = scalar_lea.vmem [#allocation5], %s305
          %s308 = ssub.s32 128, 128
          %309 = vsyncadd %s303, %s308
          %s310 = smul.addr %s24, 128
          %s311 = scalar_lea.hbm %s1, %s310
          %s313 = sshll.u32 %s306, 4
          %s314 = int_to_ptr.vmem [resolvable:$true] %s313
          %316 = dma.hbm_to_vmem [thread:$0]  %s311, 128, %s314, %s303
        $region44: #{tpu_custom_call.1} parent=35 // pred_fallthru
          _
      $region36: #{tpu_custom_call.1} parent=5 // pred_fallthru
        _
      %p317 = scmp.le.s32.totalorder 1, %s24
      %p318 = scmp.lt.s32.totalorder %s24, 3
      %p319 = pnand %p317, %p318
      %p320 = pneg %p319
      // Predicated region
      $region45: #{tpu_custom_call.1} parent=5 // pred_check
        _
      $region46: #{tpu_custom_call.1} parent=5 // pred_check_branch
        %322 = sbr.rel (%p319) target = $region48
      $region47: #{tpu_custom_call.1} parent=5 // pred_region
        %s323 = ssub.s32 %s24, 1
        %s324 = sand.u32 %s37, 1
        %s325 = scalar_lea.sflag [#allocation3], %s324
        %s326 = sand.u32 %s37, 1
        %s327 = smul.addr %s326, 8
        %s328 = scalar_lea.vmem [#allocation2], %s327
        // Predicated region
        $region49: #{tpu_custom_call.1} parent=47 // pred_check
          %p329 = pneg %p50
        $region50: #{tpu_custom_call.1} parent=47 // pred_check_branch
          %331 = sbr.rel (%p329) target = $region52
        $region51: #{tpu_custom_call.1} parent=47 // pred_region
          %332 = dma.done %s325, 128
        $region52: #{tpu_custom_call.1} parent=47 // pred_fallthru
          _
        %s333 = sand.u32 %s29, 1
        %s334 = scalar_lea.sflag [#allocation6], %s333
        %s335 = sand.u32 %s63, 1
        %s336 = smul.addr %s335, 8
        %s337 = scalar_lea.vmem [#allocation5], %s336
        // Predicated region
        $region53: #{tpu_custom_call.1} parent=47 // pred_check
          %p338 = pneg %p76
        $region54: #{tpu_custom_call.1} parent=47 // pred_check_branch
          %340 = sbr.rel (%p338) target = $region56
        $region55: #{tpu_custom_call.1} parent=47 // pred_region
          %341 = dma.done %s334, 128
        $region56: #{tpu_custom_call.1} parent=47 // pred_fallthru
          _
        // Predicated region
        $region57: #{tpu_custom_call.1} parent=47 // pred_check
          %p342 = pneg %p97
        $region58: #{tpu_custom_call.1} parent=47 // pred_check_branch
          %344 = sbr.rel (%p342) target = $region60
        $region59: #{tpu_custom_call.1} parent=47 // pred_region
          %345 = dma.done [#allocation6], 512
        $region60: #{tpu_custom_call.1} parent=47 // pred_fallthru
          _
        // Predicated region
        $region61: #{tpu_custom_call.1} parent=47 // pred_check
          %p346 = pneg %p118
        $region62: #{tpu_custom_call.1} parent=47 // pred_check_branch
          %348 = sbr.rel (%p346) target = $region64
        $region63: #{tpu_custom_call.1} parent=47 // pred_region
          %349 = dma.done [#allocation9], 512
        $region64: #{tpu_custom_call.1} parent=47 // pred_fallthru
          _
        // Predicated region
        $region65: #{tpu_custom_call.1} parent=47 // pred_check
          %p350 = pneg %p139
        $region66: #{tpu_custom_call.1} parent=47 // pred_check_branch
          %352 = sbr.rel (%p350) target = $region68
        $region67: #{tpu_custom_call.1} parent=47 // pred_region
          %353 = dma.done [#allocation9], 1024
        $region68: #{tpu_custom_call.1} parent=47 // pred_fallthru
          _
        // Predicated region
        $region69: #{tpu_custom_call.1} parent=47 // pred_check
          %p354 = pneg %p160
        $region70: #{tpu_custom_call.1} parent=47 // pred_check_branch
          %356 = sbr.rel (%p354) target = $region72
        $region71: #{tpu_custom_call.1} parent=47 // pred_region
          %357 = dma.done [#allocation12], 1024
        $region72: #{tpu_custom_call.1} parent=47 // pred_fallthru
          _
        %s358 = sand.u32 %s37, 1
        %s359 = scalar_lea.sflag [#allocation3], %s358
        %s360 = sand.u32 %s37, 1
        %s361 = smul.addr %s360, 8
        %s362 = scalar_lea.vmem [#allocation2], %s361
        %p363 = pneg %p50
        %p364 = pneg %p47
        %s365 = sand.u32 %s29, 1
        %s366 = scalar_lea.sflag [#allocation6], %s365
        %s367 = sand.u32 %s63, 1
        %s368 = smul.addr %s367, 8
        %s369 = scalar_lea.vmem [#allocation5], %s368
        %p370 = pneg %p76
        %p371 = pneg %p73
        %p372 = pneg %p97
        %p373 = pneg %p94
        %p374 = pneg %p118
        %p375 = pneg %p115
        %p376 = pneg %p139
        %p377 = pneg %p136
        %p378 = pneg %p160
        %p379 = pneg %p157
        %p380 = pneg %p181
        %p381 = pneg %p178
        %p382 = pneg %p207
        %p383 = pneg %p204
        %s384 = sand.u32 %s194, 1
        %s385 = scalar_lea.sflag [#allocation4], %s384
        %s386 = sand.u32 %s194, 1
        %s387 = smul.addr %s386, 8
        %s388 = scalar_lea.vmem [#allocation13], %s387
        %v389 = vld [vmem:[%s328] sm:$0xff]
        %v390 = vld [vmem:[%s337] sm:$0xff]
        %v391 = vld [vmem:[#allocation7] sm:$0xff]
        %v392 = vld [vmem:[#allocation7 + $0x8] sm:$0xff]
        %v393 = vld [vmem:[#allocation7 + $0x10] sm:$0xff]
        %v394 = vld [vmem:[#allocation7 + $0x18] sm:$0xff]
        %vm395 = vcmask 261120
        %v397 = vsel %vm395, %v389, 0
        %399 = vmatprep.subr.mxu0 0.0
        %400 = vmatpush1.msra.mxu0 %v391
        %401 = vmatprep.subr.mxu0 0.0
        %402 = vmatpush1.msra.mxu0 %v392
        %403 = vmatprep.subr.mxu0 0.0
        %404 = vmatpush1.msra.mxu0 %v393
        %405 = vmatprep.subr.mxu0 0.0
        %406 = vmatpush1.msra.mxu0 %v394
        %407 = vmatprep.subr.mxu0 0.0
        %408 = vmatpush1.msra.mxu0 0.0
        %409 = vmatprep.subr.mxu0 0.0
        %410 = vmatpush1.msra.mxu0 0.0
        %411 = vmatprep.subr.mxu0 0.0
        %412 = vmatpush1.msra.mxu0 0.0
        %413 = vmatprep.subr.mxu0 0.0
        %414 = vmatpush1.msra.mxu0 0.0
        %415 = vmatprep.subr.mxu0 0.0
        %416 = vmatpush1.msra.mxu0 0.0
        %417 = vmatprep.subr.mxu0 0.0
        %418 = vmatpush1.msra.mxu0 0.0
        %419 = vmatprep.subr.mxu0 0.0
        %420 = vmatpush1.msra.mxu0 0.0
        %421 = vmatprep.subr.mxu0 0.0
        %422 = vmatpush1.msra.mxu0 0.0
        %423 = vmatprep.subr.mxu0 0.0
        %424 = vmatpush1.msra.mxu0 0.0
        %425 = vmatprep.subr.mxu0 0.0
        %426 = vmatpush1.msra.mxu0 0.0
        %427 = vmatprep.subr.mxu0 0.0
        %428 = vmatpush1.msra.mxu0 0.0
        %429 = vmatprep.subr.mxu0 0.0
        %430 = vmatpush1.msra.mxu0 0.0
        %431 = vmatprep.subr.mxu0 0.0
        %432 = vmatpush1.msra.mxu0 0.0
        %433 = vmatprep.subr.mxu0 0.0
        %434 = vmatpush1.msra.mxu0 0.0
        %435 = vmatprep.subr.mxu0 0.0
        %436 = vmatpush1.msra.mxu0 0.0
        %437 = vmatprep.subr.mxu0 0.0
        %438 = vmatpush1.msra.mxu0 0.0
        %439 = vmatprep.subr.mxu0 0.0
        %440 = vmatpush1.msra.mxu0 0.0
        %441 = vmatprep.subr.mxu0 0.0
        %442 = vmatpush1.msra.mxu0 0.0
        %443 = vmatprep.subr.mxu0 0.0
        %444 = vmatpush1.msra.mxu0 0.0
        %445 = vmatprep.subr.mxu0 0.0
        %446 = vmatpush1.msra.mxu0 0.0
        %447 = vmatprep.subr.mxu0 0.0
        %448 = vmatpush1.msra.mxu0 0.0
        %449 = vmatprep.subr.mxu0 0.0
        %450 = vmatpush1.msra.mxu0 0.0
        %451 = vmatprep.subr.mxu0 0.0
        %452 = vmatpush1.msra.mxu0 0.0
        %453 = vmatprep.subr.mxu0 0.0
        %454 = vmatpush1.msra.mxu0 0.0
        %455 = vmatprep.subr.mxu0 0.0
        %456 = vmatpush1.msra.mxu0 0.0
        %457 = vmatprep.subr.mxu0 0.0
        %458 = vmatpush1.msra.mxu0 0.0
        %459 = vmatprep.subr.mxu0 0.0
        %460 = vmatpush1.msra.mxu0 0.0
        %461 = vmatprep.subr.mxu0 0.0
        %462 = vmatpush1.msra.mxu0 0.0
        %463 = vmatprep.mubr.f32.mxu0 0.0
        %464 = vmatmul.mubr.f32.gmra.mrb[0].mxu0 %v397
        %v465 = vpop.f32.mrb[0].mxu0
        %v466 = vadd.f32 0.0, %v465
        %v467 = vpop.f32.mrb[0].mxu0
        %468 = vdwg.mxu0
        %v469 = vld [vmem:[#allocation8] sm:$0xff]
        %v470 = vld [vmem:[#allocation8 + $0x8] sm:$0xff]
        %v471 = vld [vmem:[#allocation8 + $0x10] sm:$0xff]
        %v472 = vld [vmem:[#allocation8 + $0x18] sm:$0xff]
        %v474 = vsel %vm395, %v390, 0
        %476 = vmatprep.subr.mxu0 0.0
        %477 = vmatpush1.msra.mxu0 %v469
        %478 = vmatprep.subr.mxu0 0.0
        %479 = vmatpush1.msra.mxu0 %v470
        %480 = vmatprep.subr.mxu0 0.0
        %481 = vmatpush1.msra.mxu0 %v471
        %482 = vmatprep.subr.mxu0 0.0
        %483 = vmatpush1.msra.mxu0 %v472
        %484 = vmatprep.subr.mxu0 0.0
        %485 = vmatpush1.msra.mxu0 0.0
        %486 = vmatprep.subr.mxu0 0.0
        %487 = vmatpush1.msra.mxu0 0.0
        %488 = vmatprep.subr.mxu0 0.0
        %489 = vmatpush1.msra.mxu0 0.0
        %490 = vmatprep.subr.mxu0 0.0
        %491 = vmatpush1.msra.mxu0 0.0
        %492 = vmatprep.subr.mxu0 0.0
        %493 = vmatpush1.msra.mxu0 0.0
        %494 = vmatprep.subr.mxu0 0.0
        %495 = vmatpush1.msra.mxu0 0.0
        %496 = vmatprep.subr.mxu0 0.0
        %497 = vmatpush1.msra.mxu0 0.0
        %498 = vmatprep.subr.mxu0 0.0
        %499 = vmatpush1.msra.mxu0 0.0
        %500 = vmatprep.subr.mxu0 0.0
        %501 = vmatpush1.msra.mxu0 0.0
        %502 = vmatprep.subr.mxu0 0.0
        %503 = vmatpush1.msra.mxu0 0.0
        %504 = vmatprep.subr.mxu0 0.0
        %505 = vmatpush1.msra.mxu0 0.0
        %506 = vmatprep.subr.mxu0 0.0
        %507 = vmatpush1.msra.mxu0 0.0
        %508 = vmatprep.subr.mxu0 0.0
        %509 = vmatpush1.msra.mxu0 0.0
        %510 = vmatprep.subr.mxu0 0.0
        %511 = vmatpush1.msra.mxu0 0.0
        %512 = vmatprep.subr.mxu0 0.0
        %513 = vmatpush1.msra.mxu0 0.0
        %514 = vmatprep.subr.mxu0 0.0
        %515 = vmatpush1.msra.mxu0 0.0
        %516 = vmatprep.subr.mxu0 0.0
        %517 = vmatpush1.msra.mxu0 0.0
        %518 = vmatprep.subr.mxu0 0.0
        %519 = vmatpush1.msra.mxu0 0.0
        %520 = vmatprep.subr.mxu0 0.0
        %521 = vmatpush1.msra.mxu0 0.0
        %522 = vmatprep.subr.mxu0 0.0
        %523 = vmatpush1.msra.mxu0 0.0
        %524 = vmatprep.subr.mxu0 0.0
        %525 = vmatpush1.msra.mxu0 0.0
        %526 = vmatprep.subr.mxu0 0.0
        %527 = vmatpush1.msra.mxu0 0.0
        %528 = vmatprep.subr.mxu0 0.0
        %529 = vmatpush1.msra.mxu0 0.0
        %530 = vmatprep.subr.mxu0 0.0
        %531 = vmatpush1.msra.mxu0 0.0
        %532 = vmatprep.subr.mxu0 0.0
        %533 = vmatpush1.msra.mxu0 0.0
        %534 = vmatprep.subr.mxu0 0.0
        %535 = vmatpush1.msra.mxu0 0.0
        %536 = vmatprep.subr.mxu0 0.0
        %537 = vmatpush1.msra.mxu0 0.0
        %538 = vmatprep.subr.mxu0 0.0
        %539 = vmatpush1.msra.mxu0 0.0
        %540 = vmatprep.mubr.f32.mxu0 0.0
        %541 = vmatmul.mubr.f32.gmra.mrb[0].mxu0 %v474
        %v542 = vpop.f32.mrb[0].mxu0
        %v543 = vadd.f32 0.0, %v542
        %v544 = vpop.f32.mrb[0].mxu0
        %545 = vdwg.mxu0
        %v546 = vld [vmem:[#allocation10] sm:$0xff]
        %v547 = vld [vmem:[#allocation10 + $0x8] sm:$0xff]
        %v548 = vld [vmem:[#allocation10 + $0x10] sm:$0xff]
        %v549 = vld [vmem:[#allocation10 + $0x18] sm:$0xff]
        %v550 = vld [vmem:[#allocation10 + $0x20] sm:$0xff]
        %v551 = vld [vmem:[#allocation10 + $0x28] sm:$0xff]
        %v552 = vld [vmem:[#allocation10 + $0x30] sm:$0xff]
        %v553 = vld [vmem:[#allocation10 + $0x38] sm:$0xff]
        %v554 = vld [vmem:[#allocation11] sm:$0xff]
        %v555 = vld [vmem:[#allocation11 + $0x8] sm:$0xff]
        %v556 = vld [vmem:[#allocation11 + $0x10] sm:$0xff]
        %v557 = vld [vmem:[#allocation11 + $0x18] sm:$0xff]
        %v558 = vld [vmem:[#allocation11 + $0x20] sm:$0xff]
        %v559 = vld [vmem:[#allocation11 + $0x28] sm:$0xff]
        %v560 = vld [vmem:[#allocation11 + $0x30] sm:$0xff]
        %v561 = vld [vmem:[#allocation11 + $0x38] sm:$0xff]
        %v563 = vsel %vm395, %v543, 0
        %565 = vmatprep.subr.mxu0 %v555
        %566 = vmatpush1.msra.mxu0 %v554
        %567 = vmatprep.subr.mxu0 %v557
        %568 = vmatpush1.msra.mxu0 %v556
        %569 = vmatprep.subr.mxu0 %v559
        %570 = vmatpush1.msra.mxu0 %v558
        %571 = vmatprep.subr.mxu0 %v561
        %572 = vmatpush1.msra.mxu0 %v560
        %573 = vmatprep.subr.mxu0 0.0
        %574 = vmatpush1.msra.mxu0 0.0
        %575 = vmatprep.subr.mxu0 0.0
        %576 = vmatpush1.msra.mxu0 0.0
        %577 = vmatprep.subr.mxu0 0.0
        %578 = vmatpush1.msra.mxu0 0.0
        %579 = vmatprep.subr.mxu0 0.0
        %580 = vmatpush1.msra.mxu0 0.0
        %581 = vmatprep.subr.mxu0 0.0
        %582 = vmatpush1.msra.mxu0 0.0
        %583 = vmatprep.subr.mxu0 0.0
        %584 = vmatpush1.msra.mxu0 0.0
        %585 = vmatprep.subr.mxu0 0.0
        %586 = vmatpush1.msra.mxu0 0.0
        %587 = vmatprep.subr.mxu0 0.0
        %588 = vmatpush1.msra.mxu0 0.0
        %589 = vmatprep.subr.mxu0 0.0
        %590 = vmatpush1.msra.mxu0 0.0
        %591 = vmatprep.subr.mxu0 0.0
        %592 = vmatpush1.msra.mxu0 0.0
        %593 = vmatprep.subr.mxu0 0.0
        %594 = vmatpush1.msra.mxu0 0.0
        %595 = vmatprep.subr.mxu0 0.0
        %596 = vmatpush1.msra.mxu0 0.0
        %597 = vmatprep.subr.mxu0 0.0
        %598 = vmatpush1.msra.mxu0 0.0
        %599 = vmatprep.subr.mxu0 0.0
        %600 = vmatpush1.msra.mxu0 0.0
        %601 = vmatprep.subr.mxu0 0.0
        %602 = vmatpush1.msra.mxu0 0.0
        %603 = vmatprep.subr.mxu0 0.0
        %604 = vmatpush1.msra.mxu0 0.0
        %605 = vmatprep.subr.mxu0 0.0
        %606 = vmatpush1.msra.mxu0 0.0
        %607 = vmatprep.subr.mxu0 0.0
        %608 = vmatpush1.msra.mxu0 0.0
        %609 = vmatprep.subr.mxu0 0.0
        %610 = vmatpush1.msra.mxu0 0.0
        %611 = vmatprep.subr.mxu0 0.0
        %612 = vmatpush1.msra.mxu0 0.0
        %613 = vmatprep.subr.mxu0 0.0
        %614 = vmatpush1.msra.mxu0 0.0
        %615 = vmatprep.subr.mxu0 0.0
        %616 = vmatpush1.msra.mxu0 0.0
        %617 = vmatprep.subr.mxu0 0.0
        %618 = vmatpush1.msra.mxu0 0.0
        %619 = vmatprep.subr.mxu0 0.0
        %620 = vmatpush1.msra.mxu0 0.0
        %621 = vmatprep.subr.mxu0 0.0
        %622 = vmatpush1.msra.mxu0 0.0
        %623 = vmatprep.subr.mxu0 0.0
        %624 = vmatpush1.msra.mxu0 0.0
        %625 = vmatprep.subr.mxu0 0.0
        %626 = vmatpush1.msra.mxu0 0.0
        %627 = vmatprep.subr.mxu0 0.0
        %628 = vmatpush1.msra.mxu0 0.0
        %629 = vmatprep.mubr.f32.mxu0 0.0
        %630 = vmatmul.mubr.f32.gmra.mrb[0].mxu0 %v563
        %v631 = vpop.f32.mrb[0].mxu0
        %v632 = vadd.f32 0.0, %v631
        %v633 = vpop.f32.mrb[0].mxu0
        %v634 = vadd.f32 0.0, %v633
        %635 = vdwg.mxu0
        %v637 = vsel %vm395, %v466, 0
        %639 = vmatprep.subr.mxu0 %v547
        %640 = vmatpush1.msra.mxu0 %v546
        %641 = vmatprep.subr.mxu0 %v549
        %642 = vmatpush1.msra.mxu0 %v548
        %643 = vmatprep.subr.mxu0 %v551
        %644 = vmatpush1.msra.mxu0 %v550
        %645 = vmatprep.subr.mxu0 %v553
        %646 = vmatpush1.msra.mxu0 %v552
        %647 = vmatprep.subr.mxu0 0.0
        %648 = vmatpush1.msra.mxu0 0.0
        %649 = vmatprep.subr.mxu0 0.0
        %650 = vmatpush1.msra.mxu0 0.0
        %651 = vmatprep.subr.mxu0 0.0
        %652 = vmatpush1.msra.mxu0 0.0
        %653 = vmatprep.subr.mxu0 0.0
        %654 = vmatpush1.msra.mxu0 0.0
        %655 = vmatprep.subr.mxu0 0.0
        %656 = vmatpush1.msra.mxu0 0.0
        %657 = vmatprep.subr.mxu0 0.0
        %658 = vmatpush1.msra.mxu0 0.0
        %659 = vmatprep.subr.mxu0 0.0
        %660 = vmatpush1.msra.mxu0 0.0
        %661 = vmatprep.subr.mxu0 0.0
        %662 = vmatpush1.msra.mxu0 0.0
        %663 = vmatprep.subr.mxu0 0.0
        %664 = vmatpush1.msra.mxu0 0.0
        %665 = vmatprep.subr.mxu0 0.0
        %666 = vmatpush1.msra.mxu0 0.0
        %667 = vmatprep.subr.mxu0 0.0
        %668 = vmatpush1.msra.mxu0 0.0
        %669 = vmatprep.subr.mxu0 0.0
        %670 = vmatpush1.msra.mxu0 0.0
        %671 = vmatprep.subr.mxu0 0.0
        %672 = vmatpush1.msra.mxu0 0.0
        %673 = vmatprep.subr.mxu0 0.0
        %674 = vmatpush1.msra.mxu0 0.0
        %675 = vmatprep.subr.mxu0 0.0
        %676 = vmatpush1.msra.mxu0 0.0
        %677 = vmatprep.subr.mxu0 0.0
        %678 = vmatpush1.msra.mxu0 0.0
        %679 = vmatprep.subr.mxu0 0.0
        %680 = vmatpush1.msra.mxu0 0.0
        %681 = vmatprep.subr.mxu0 0.0
        %682 = vmatpush1.msra.mxu0 0.0
        %683 = vmatprep.subr.mxu0 0.0
        %684 = vmatpush1.msra.mxu0 0.0
        %685 = vmatprep.subr.mxu0 0.0
        %686 = vmatpush1.msra.mxu0 0.0
        %687 = vmatprep.subr.mxu0 0.0
        %688 = vmatpush1.msra.mxu0 0.0
        %689 = vmatprep.subr.mxu0 0.0
        %690 = vmatpush1.msra.mxu0 0.0
        %691 = vmatprep.subr.mxu0 0.0
        %692 = vmatpush1.msra.mxu0 0.0
        %693 = vmatprep.subr.mxu0 0.0
        %694 = vmatpush1.msra.mxu0 0.0
        %695 = vmatprep.subr.mxu0 0.0
        %696 = vmatpush1.msra.mxu0 0.0
        %697 = vmatprep.subr.mxu0 0.0
        %698 = vmatpush1.msra.mxu0 0.0
        %699 = vmatprep.subr.mxu0 0.0
        %700 = vmatpush1.msra.mxu0 0.0
        %701 = vmatprep.subr.mxu0 0.0
        %702 = vmatpush1.msra.mxu0 0.0
        %703 = vmatprep.mubr.f32.mxu0 0.0
        %704 = vmatmul.mubr.f32.gmra.mrb[0].mxu0 %v637
        %v705 = vpop.f32.mrb[0].mxu0
        %v706 = vadd.f32 %v632, %v705
        %v707 = vpop.f32.mrb[0].mxu0
        %v708 = vadd.f32 %v634, %v707
        %709 = vdwg.mxu0
        %vm710 = vcmp.gt.f32.partialorder %v706, 0.0
        %v711 = vmul.f32 %v706, 0.2
        %v712 = vsel %vm710, %v706, %v711
        %v713 = vadd.f32 %v712, 1.0
        %vm714 = vcmp.gt.f32.partialorder %v708, 0.0
        %v715 = vmul.f32 %v708, 0.2
        %v716 = vsel %vm714, %v708, %v715
        %v717 = vld [vmem:[%s6] sm:$0x1]
        %v719 = vlaneseq
        %v720 = vshrl.u32 %v719, 7
        %v721 = vsub.s32 0, %v720
        %v722 = vrot.slane %v717, %v721
        %v724 = vmul.f32 %v713, %v722
        %v725 = vadd.f32 %v724, %v716
        %v726 = vadd.f32 %v389, %v725
        %v727 = vsub.f32 %v726, %v390
        %v728 = vmul.f32 %v727, %v727
        %v729 = vsel %vm395, %v728, 0.0
        %730 = vadd.xlane.f32.xlu0 %v729
        %v731 = vpop.xlane.xlu0 %730
        %v732 = vmax.f32 %v731, 1e-24
        %v733 = vrsqrt.pop %v732
        %v734 = vmul.f32 %v727, %v733
        %735 = vst.msk [vmem:[%s388] sm:$0xff] %vm395, %v734
        %s736 = sand.u32 %s194, 1
        %s737 = scalar_lea.sflag [#allocation4], %s736
        %s738 = sand.u32 %s194, 1
        %s739 = smul.addr %s738, 8
        %s740 = scalar_lea.vmem [#allocation13], %s739
        // Predicated region
        $region73: #{tpu_custom_call.1} parent=47 // pred_check
          %p741 = pneg %p204
        $region74: #{tpu_custom_call.1} parent=47 // pred_check_branch
          %743 = sbr.rel (%p741) target = $region76
        $region75: #{tpu_custom_call.1} parent=47 // pred_region
          %s745 = ssub.s32 128, 128
          %746 = vsyncadd %s737, %s745
          %s747 = smul.addr %s29, 128
          %s748 = scalar_lea.hbm %s7, %s747
          %s750 = sshll.u32 %s740, 4
          %s751 = int_to_ptr.vmem [resolvable:$true] %s750
          %753 = dma.vmem_to_hbm [thread:$0]  %s751, 128, %s748, %s737
        $region76: #{tpu_custom_call.1} parent=47 // pred_fallthru
          _
      $region48: #{tpu_custom_call.1} parent=5 // pred_fallthru
        _
      %p754 = scmp.le.s32.totalorder 2, %s24
      // Predicated region
      $region77: #{tpu_custom_call.1} parent=5 // pred_check
        %p755 = pneg %p754
      $region78: #{tpu_custom_call.1} parent=5 // pred_check_branch
        %757 = sbr.rel (%p755) target = $region80
      $region79: #{tpu_custom_call.1} parent=5 // pred_region
        %s758 = ssub.s32 %s24, 2
        // Predicated region
        $region81: #{tpu_custom_call.1} parent=79 // pred_check
          %p759 = pneg %p210
        $region82: #{tpu_custom_call.1} parent=79 // pred_check_branch
          %761 = sbr.rel (%p759) target = $region84
        $region83: #{tpu_custom_call.1} parent=79 // pred_region
          %s762 = sand.u32 %s195, 1
          %s763 = scalar_lea.sflag [#allocation4], %s762
          %s764 = sand.u32 %s195, 1
          %s765 = smul.addr %s764, 8
          %s766 = scalar_lea.vmem [#allocation13], %s765
          %767 = dma.done %s763, 128
        $region84: #{tpu_custom_call.1} parent=79 // pred_fallthru
          _
      $region80: #{tpu_custom_call.1} parent=5 // pred_fallthru
        _
    $region6: #{tpu_custom_call.1} parent=1 // loop_footer
      %s28 = sadd.s32 1, %s24
    $region7: #{tpu_custom_call.1} parent=1 // loop_footer_branch
      %23 = sbr.rel target = $region3
    $region8: #{tpu_custom_call.1} parent=1 // loop_exit
      _
    %768 = vsyncpa [#allocation3], 1
    %s769 = scalar_lea.sflag [#allocation3], 1
    %770 = vsyncpa %s769, 1
    %771 = vsyncpa [#allocation6], 1
    %s772 = scalar_lea.sflag [#allocation6], 1
    %773 = vsyncpa %s772, 1
    %774 = vsyncpa [#allocation9], 1
    %775 = vsyncpa [#allocation12], 1
    %776 = vsyncpa [#allocation4], 1
    %s777 = scalar_lea.sflag [#allocation4], 1
    %778 = vsyncpa %s777, 1

</llo_original>
